<compile_context>
chip_gen: v6e
topology: v6e:2x2x1
jax: 0.10.0
libtpu: 0.0.40
codegen_flags: <defaults>
</compile_context>

<pallas_src>
import jax
import jax.numpy as jnp
from jax import lax
from jax.experimental import pallas as pl
from jax.experimental.pallas import tpu as pltpu


# ----------------------------------------------------------------------------
# plain-JAX glue: parameter preprocessing + im2col
# ----------------------------------------------------------------------------
def _round_up(x, m):
    return (x + m - 1) // m * m


def _spectral_norm(w, n_iter=10, eps=1e-12):
    # TODO(synk): PyTorch spectral_norm keeps a persistent random `u` and does a
    # single power iteration per forward; here we use a deterministic start
    # vector and a few iterations (setup-time glue), so values differ slightly.
    oc = w.shape[0]
    wm = w.reshape(oc, -1).astype(jnp.float32)
    u = jnp.ones((oc,), jnp.float32) / jnp.sqrt(jnp.float32(oc))
    v = jnp.zeros((wm.shape[1],), jnp.float32)
    for _ in range(n_iter):
        v = wm.T @ u
        v = v / (jnp.linalg.norm(v) + eps)
        u = wm @ v
        u = u / (jnp.linalg.norm(u) + eps)
    sigma = u @ (wm @ v)
    return w / sigma


def _im2col(x_nhwc, k, stride, pad):
    # Extract k x k patches -> (N, OH, OW, k*k*C); patch element order (kh, kw, c).
    # TODO(synk): patches are still materialized in HBM by XLA; an in-kernel
    # band-DMA gather would cut the dominant HBM read ~4x.
    n, h, w, c = x_nhwc.shape
    xp = jnp.pad(x_nhwc, ((0, 0), (pad, pad), (pad, pad), (0, 0)))
    oh = (h + 2 * pad - k) // stride + 1
    ow = (w + 2 * pad - k) // stride + 1
    cols = []
    for kh in range(k):
        for kw in range(k):
            cols.append(xp[:, kh:kh + stride * oh:stride, kw:kw + stride * ow:stride, :])
    patches = jnp.stack(cols, axis=3)               # (N, OH, OW, k*k, C)
    return patches.reshape(n, oh, ow, k * k * c), oh, ow


# ----------------------------------------------------------------------------
# Pallas kernels
# ----------------------------------------------------------------------------
def _conv_stats_kernel(p_ref, w_ref, o_ref, stats_ref, acc_ref):
    # Row/K-tiled conv matmul; on the last K step emit the conv tile (bf16) and
    # per-channel sum / sum-of-squares for the two-pass BatchNorm.
    kk = pl.program_id(1)

    @pl.when(kk == 0)
    def _():
        acc_ref[...] = jnp.zeros_like(acc_ref)

    acc_ref[...] += jnp.dot(p_ref[...], w_ref[...],
                            preferred_element_type=jnp.float32)

    @pl.when(kk == pl.num_programs(1) - 1)
    def _():
        conv = acc_ref[...]                                          # (TR, OCp) f32
        o_ref[...] = conv.astype(o_ref.dtype)
        s1 = jnp.sum(conv, axis=0, keepdims=True)
        s2 = jnp.sum(conv * conv, axis=0, keepdims=True)
        stats_ref[0] = jnp.concatenate(
            [s1, s2, jnp.zeros((6, conv.shape[1]), jnp.float32)], axis=0)


def _conv_bias_kernel(p_ref, w_ref, b_ref, o_ref, acc_ref):
    # `last=True` branch: spectral-norm conv with bias, no BN/activation.
    kk = pl.program_id(1)

    @pl.when(kk == 0)
    def _():
        acc_ref[...] = jnp.zeros_like(acc_ref)

    acc_ref[...] += jnp.dot(p_ref[...], w_ref[...],
                            preferred_element_type=jnp.float32)

    @pl.when(kk == pl.num_programs(1) - 1)
    def _():
        o_ref[...] = acc_ref[...] + b_ref[...]


def _bn_lrelu_kernel(x_ref, scale_ref, shift_ref, o_ref):
    # BN application (precomputed scale/shift) + LeakyReLU(0.2), f32 elementwise.
    y = x_ref[...].astype(jnp.float32) * scale_ref[...] + shift_ref[...]
    o_ref[...] = jnp.where(y >= 0.0, y, 0.2 * y)


def _bn_lrelu_attn_kernel(x_ref, scale_ref, shift_ref,
                          wq_ref, bq_ref, wk_ref, bk_ref, wv_ref, bv_ref,
                          g_ref, o_ref):
    # One batch element per grid step (leading dim squeezed by the BlockSpec).
    # Fused BN + LeakyReLU epilogue, then SAGAN self-attention.
    y = x_ref[...].astype(jnp.float32) * scale_ref[...] + shift_ref[...]
    x = jnp.where(y >= 0.0, y, 0.2 * y)                               # (S, OCp) f32

    xb = x.astype(jnp.bfloat16)
    q = jnp.dot(xb, wq_ref[...], preferred_element_type=jnp.float32) + bq_ref[...]
    k = jnp.dot(xb, wk_ref[...], preferred_element_type=jnp.float32) + bk_ref[...]
    v = jnp.dot(xb, wv_ref[...], preferred_element_type=jnp.float32) + bv_ref[...]

    # scores[i, j] = sum_c q[i, c] * k[j, c]  (contract channel axis, no transpose copy)
    s = lax.dot_general(q.astype(jnp.bfloat16), k.astype(jnp.bfloat16),
                        (((1,), (1,)), ((), ())),
                        preferred_element_type=jnp.float32)           # (S, S)
    s = s - jnp.max(s, axis=-1, keepdims=True)
    e = jnp.exp(s)
    p = e * pl.reciprocal(jnp.sum(e, axis=-1, keepdims=True), approx=True)

    attn = jnp.dot(p.astype(jnp.bfloat16), v.astype(jnp.bfloat16),
                   preferred_element_type=jnp.float32)                # (S, OCp)
    # TODO(synk): for S >= ~2048 tile the key axis with online softmax to fit
    # v7x's 64 MiB VMEM; not needed at these feature-map sizes.
    o_ref[...] = g_ref[0] * attn + x


# ----------------------------------------------------------------------------
# wrapper
# ----------------------------------------------------------------------------
def sa_discriminator_block(x_nchw, params, *, last=False, with_attn=False):
    x = jnp.transpose(x_nchw, (0, 2, 3, 1)).astype(jnp.float32)       # NCHW -> NHWC
    n, h, w, c = x.shape
    ksz, stride = 4, 2
    pad = 0 if last else 1
    oc = 1 if last else 2 * c

    # conv as im2col matmul; pad contraction + output channels to 128 multiples
    w_sn = _spectral_norm(params["conv_w"])                           # (OC, IC, 4, 4)
    w_mat = jnp.transpose(w_sn, (2, 3, 1, 0)).reshape(ksz * ksz * c, oc)
    patches, oh, ow = _im2col(x, ksz, stride, pad)

    rows = n * oh * ow
    kdim = ksz * ksz * c
    kdim_p = _round_up(kdim, 128)
    oc_p = _round_up(oc, 128)

    tile_r = min(512, _round_up(rows, 8))
    rows_p = _round_up(rows, tile_r)
    tile_k = min(512, kdim_p)
    n_rt = rows_p // tile_r
    n_kt = kdim_p // tile_k

    p_mat = jnp.zeros((rows_p, kdim_p), jnp.bfloat16)
    p_mat = p_mat.at[:rows, :kdim].set(
        patches.reshape(rows, kdim).astype(jnp.bfloat16))
    w_pad = jnp.zeros((kdim_p, oc_p), jnp.bfloat16)
    w_pad = w_pad.at[:kdim, :oc].set(w_mat.astype(jnp.bfloat16))

    conv_params = pltpu.CompilerParams(
        dimension_semantics=("parallel", "arbitrary"))

    if last:
        b_pad = jnp.zeros((1, oc_p), jnp.float32).at[0, :oc].set(
            params["conv_b"].astype(jnp.float32))
        out_pad = pl.pallas_call(
            _conv_bias_kernel,
            out_shape=jax.ShapeDtypeStruct((rows_p, oc_p), jnp.float32),
            grid=(n_rt, n_kt),
            in_specs=[
                pl.BlockSpec((tile_r, tile_k), lambda i, k: (i, k)),
                pl.BlockSpec((tile_k, oc_p), lambda i, k: (k, 0)),
                pl.BlockSpec((1, oc_p), lambda i, k: (0, 0)),
            ],
            out_specs=pl.BlockSpec((tile_r, oc_p), lambda i, k: (i, 0)),
            scratch_shapes=[pltpu.VMEM((tile_r, oc_p), jnp.float32)],
            compiler_params=conv_params,
        )(p_mat, w_pad, b_pad)
        out = out_pad[:rows, :oc].reshape(n, oh, ow, oc)
        return jnp.transpose(out, (0, 3, 1, 2))

    # ---- pass 1: tiled conv + per-tile BN statistics --------------------------
    conv_pad, pstats = pl.pallas_call(
        _conv_stats_kernel,
        out_shape=(jax.ShapeDtypeStruct((rows_p, oc_p), jnp.bfloat16),
                   jax.ShapeDtypeStruct((n_rt, 8, oc_p), jnp.float32)),
        grid=(n_rt, n_kt),
        in_specs=[
            pl.BlockSpec((tile_r, tile_k), lambda i, k: (i, k)),
            pl.BlockSpec((tile_k, oc_p), lambda i, k: (k, 0)),
        ],
        out_specs=(
            pl.BlockSpec((tile_r, oc_p), lambda i, k: (i, 0)),
            pl.BlockSpec((1, 8, oc_p), lambda i, k: (i, 0, 0)),
        ),
        scratch_shapes=[pltpu.VMEM((tile_r, oc_p), jnp.float32)],
        compiler_params=conv_params,
    )(p_mat, w_pad)

    # BatchNorm2d, training-mode batch statistics (biased variance), eps=1e-5.
    # Padded rows/channels contribute zero to the sums; divide by the true count.
    sum_c = jnp.sum(pstats[:, 0, :], axis=0)
    sumsq_c = jnp.sum(pstats[:, 1, :], axis=0)
    mean = sum_c / rows
    var = jnp.maximum(sumsq_c / rows - mean * mean, 0.0)
    gamma_p = jnp.zeros((oc_p,), jnp.float32).at[:oc].set(
        params["bn_gamma"].astype(jnp.float32))
    beta_p = jnp.zeros((oc_p,), jnp.float32).at[:oc].set(
        params["bn_beta"].astype(jnp.float32))
    inv = lax.rsqrt(var + 1e-5)
    scale = (gamma_p * inv).reshape(1, oc_p)
    shift = (beta_p - mean * gamma_p * inv).reshape(1, oc_p)

    if not with_attn:
        # ---- pass 2: BN apply + LeakyReLU, tiled over rows --------------------
        out_pad = pl.pallas_call(
            _bn_lrelu_kernel,
            out_shape=jax.ShapeDtypeStruct((rows_p, oc_p), jnp.float32),
            grid=(n_rt,),
            in_specs=[
                pl.BlockSpec((tile_r, oc_p), lambda i: (i, 0)),
                pl.BlockSpec((1, oc_p), lambda i: (0, 0)),
                pl.BlockSpec((1, oc_p), lambda i: (0, 0)),
            ],
            out_specs=pl.BlockSpec((tile_r, oc_p), lambda i: (i, 0)),
            compiler_params=pltpu.CompilerParams(
                dimension_semantics=("parallel",)),
        )(conv_pad, scale, shift)
        out = out_pad[:rows, :oc].reshape(n, oh, ow, oc)
        return jnp.transpose(out, (0, 3, 1, 2))

    # ---- pass 2 (fused): BN apply + LeakyReLU + self-attention ----------------
    s_len = oh * ow
    ca = oc // 8                                     # attention_dim_div = 8
    ca_p = _round_up(ca, 128)

    x_attn = conv_pad[:rows].reshape(n, s_len, oc_p)

    wq_p = jnp.zeros((oc_p, ca_p), jnp.bfloat16).at[:oc, :ca].set(
        params["wq"].reshape(ca, oc).T.astype(jnp.bfloat16))
    wk_p = jnp.zeros((oc_p, ca_p), jnp.bfloat16).at[:oc, :ca].set(
        params["wk"].reshape(ca, oc).T.astype(jnp.bfloat16))
    wv_p = jnp.zeros((oc_p, oc_p), jnp.bfloat16).at[:oc, :oc].set(
        params["wv"].reshape(oc, oc).T.astype(jnp.bfloat16))
    bq_p = jnp.zeros((1, ca_p), jnp.float32).at[0, :ca].set(
        params["bq"].astype(jnp.float32))
    bk_p = jnp.zeros((1, ca_p), jnp.float32).at[0, :ca].set(
        params["bk"].astype(jnp.float32))
    bv_p = jnp.zeros((1, oc_p), jnp.float32).at[0, :oc].set(
        params["bv"].astype(jnp.float32))
    gamma = params["attn_gamma"].reshape(1).astype(jnp.float32)

    out_attn = pl.pallas_call(
        _bn_lrelu_attn_kernel,
        out_shape=jax.ShapeDtypeStruct((n, s_len, oc_p), jnp.float32),
        grid=(n,),
        in_specs=[
            pl.BlockSpec((None, s_len, oc_p), lambda b: (b, 0, 0)),   # squeezed batch
            pl.BlockSpec((1, oc_p), lambda b: (0, 0)),
            pl.BlockSpec((1, oc_p), lambda b: (0, 0)),
            pl.BlockSpec((oc_p, ca_p), lambda b: (0, 0)),
            pl.BlockSpec((1, ca_p), lambda b: (0, 0)),
            pl.BlockSpec((oc_p, ca_p), lambda b: (0, 0)),
            pl.BlockSpec((1, ca_p), lambda b: (0, 0)),
            pl.BlockSpec((oc_p, oc_p), lambda b: (0, 0)),
            pl.BlockSpec((1, oc_p), lambda b: (0, 0)),
            pl.BlockSpec(memory_space=pltpu.MemorySpace.SMEM),        # gamma scalar
        ],
        out_specs=pl.BlockSpec((None, s_len, oc_p), lambda b: (b, 0, 0)),
        compiler_params=pltpu.CompilerParams(
            dimension_semantics=("parallel",)),
    )(x_attn, scale, shift, wq_p, bq_p, wk_p, bk_p, wv_p, bv_p, gamma)

    out = out_attn[:, :, :oc].reshape(n, oh, ow, oc)
    return jnp.transpose(out, (0, 3, 1, 2))


# ----------------------------------------------------------------------------
if __name__ == "__main__":
    key = jax.random.PRNGKey(0)
    n, c, h, w = 2, 4, 16, 16            # small NCHW input
    oc = 2 * c                           # not-last branch: out_channels = 2*in_channels
    ca = oc // 8                         # attention dim
    ks = jax.random.split(key, 8)

    x = jax.random.normal(ks[0], (n, c, h, w), jnp.float32)
    params = {
        # spectral-norm conv: (OC, IC, 4, 4), bias=False in the not-last branch
        "conv_w": 0.1 * jax.random.normal(ks[1], (oc, c, 4, 4), jnp.float32),
        # BatchNorm2d default init
        "bn_gamma": jnp.ones((oc,), jnp.float32),
        "bn_beta": jnp.zeros((oc,), jnp.float32),
        # Attention 1x1 convs (stored as (out, in) matrices)
        "wq": 0.1 * jax.random.normal(ks[2], (ca, oc), jnp.float32),
        "bq": jnp.zeros((ca,), jnp.float32),
        "wk": 0.1 * jax.random.normal(ks[3], (ca, oc), jnp.float32),
        "bk": jnp.zeros((ca,), jnp.float32),
        "wv": 0.1 * jax.random.normal(ks[4], (oc, oc), jnp.float32),
        "bv": jnp.zeros((oc,), jnp.float32),
        # nn.Parameter(torch.zeros(1)) — zero-init gamma, attention path still executed
        "attn_gamma": jnp.zeros((1,), jnp.float32),
    }

    out = sa_discriminator_block(x, params, last=False, with_attn=True)
    out = jax.block_until_ready(out)
    assert out.shape == (n, oc, h // 2, w // 2), out.shape
    assert jnp.all(jnp.isfinite(out))

    # also exercise the last=True branch (spectral-norm conv + bias, no BN/attn)
    params_last = {
        "conv_w": 0.1 * jax.random.normal(ks[5], (1, c, 4, 4), jnp.float32),
        "conv_b": jnp.zeros((1,), jnp.float32),
    }
    out_last = sa_discriminator_block(x, params_last, last=True)
    out_last = jax.block_until_ready(out_last)
    assert out_last.shape == (n, 1, (h - 4) // 2 + 1, (w - 4) // 2 + 1), out_last.shape
    assert jnp.all(jnp.isfinite(out_last))

    print("KERNEL_OK")
</pallas_src>

<mosaic_0001>
module attributes {stable_mosaic.version = 11 : i64} {
  func.func @_conv_stats_kernel(%arg0: i32, %arg1: i32, %arg2: memref<128x128xbf16, #tpu.memory_space<vmem>>, %arg3: memref<128x128xbf16, #tpu.memory_space<vmem>>, %arg4: memref<128x128xbf16, #tpu.memory_space<vmem>>, %arg5: memref<1x8x128xf32, #tpu.memory_space<vmem>>, %arg6: memref<128x128xf32, #tpu.memory_space<vmem>>) attributes {dimension_semantics = [#tpu.dimension_semantics<parallel>, #tpu.dimension_semantics<arbitrary>], iteration_bounds = array<i64: 1, 1>, scalar_prefetch = 0 : i64, scratch_operands = 1 : i64, tpu.core_type = #tpu.core_type<tc>, window_params = [{transform_indices = @transform_0, window_bounds = array<i64: 128, 128>}, {transform_indices = @transform_1, window_bounds = array<i64: 128, 128>}, {transform_indices = @transform_2, window_bounds = array<i64: 128, 128>}, {transform_indices = @transform_3, window_bounds = array<i64: 1, 8, 128>}]} {
    %c0_i32 = arith.constant 0 : i32
    %0 = arith.cmpi eq, %arg1, %c0_i32 : i32
    %1 = arith.extui %0 : i1 to i32
    %c0_i32_0 = arith.constant 0 : i32
    %2 = arith.cmpi ne, %1, %c0_i32_0 : i32
    scf.if %2 {
      %cst_10 = arith.constant 0.000000e+00 : f32
      %12 = vector.broadcast %cst_10 : f32 to vector<128x128xf32>
      %c0_11 = arith.constant 0 : index
      %c0_12 = arith.constant 0 : index
      %13 = vector.load %arg6[%c0_11, %c0_12] : memref<128x128xf32, #tpu.memory_space<vmem>>, vector<128x128xf32>
      tpu.vector_store %arg6[%c0_11, %c0_12], %12 {strides = array<i32>} : memref<128x128xf32, #tpu.memory_space<vmem>>, vector<128x128xf32>,
    } else {
    }
    %c0 = arith.constant 0 : index
    %c0_1 = arith.constant 0 : index
    %3 = vector.load %arg6[%c0, %c0_1] : memref<128x128xf32, #tpu.memory_space<vmem>>, vector<128x128xf32>
    %c0_2 = arith.constant 0 : index
    %c0_3 = arith.constant 0 : index
    %4 = vector.load %arg2[%c0_2, %c0_3] : memref<128x128xbf16, #tpu.memory_space<vmem>>, vector<128x128xbf16>
    %c0_4 = arith.constant 0 : index
    %c0_5 = arith.constant 0 : index
    %5 = vector.load %arg3[%c0_4, %c0_5] : memref<128x128xbf16, #tpu.memory_space<vmem>>, vector<128x128xbf16>
    %cst = arith.constant dense<0.000000e+00> : vector<128x128xf32>
    %6 = tpu.matmul %4, %5, %cst {dimension_numbers = #tpu.dot_dimension_numbers<[1], [0], [0], [1], [0, 0, 1, 1], [], []>} : vector<128x128xbf16>, vector<128x128xbf16>, vector<128x128xf32> -> vector<128x128xf32>
    %7 = arith.addf %3, %6 : vector<128x128xf32>
    %c0_6 = arith.constant 0 : index
    %c0_7 = arith.constant 0 : index
    %8 = vector.load %arg6[%c0_6, %c0_7] : memref<128x128xf32, #tpu.memory_space<vmem>>, vector<128x128xf32>
    tpu.vector_store %arg6[%c0_6, %c0_7], %7 {strides = array<i32>} : memref<128x128xf32, #tpu.memory_space<vmem>>, vector<128x128xf32>,
    %c0_i32_8 = arith.constant 0 : i32
    %9 = arith.cmpi eq, %arg1, %c0_i32_8 : i32
    %10 = arith.extui %9 : i1 to i32
    %c0_i32_9 = arith.constant 0 : i32
    %11 = arith.cmpi ne, %10, %c0_i32_9 : i32
    scf.if %11 {
      %c0_10 = arith.constant 0 : index
      %c0_11 = arith.constant 0 : index
      %12 = vector.load %arg6[%c0_10, %c0_11] : memref<128x128xf32, #tpu.memory_space<vmem>>, vector<128x128xf32>
      %13 = arith.truncf %12 : vector<128x128xf32> to vector<128x128xbf16>
      %c0_12 = arith.constant 0 : index
      %c0_13 = arith.constant 0 : index
      %14 = vector.load %arg4[%c0_12, %c0_13] : memref<128x128xbf16, #tpu.memory_space<vmem>>, vector<128x128xbf16>
      tpu.vector_store %arg4[%c0_12, %c0_13], %13 {strides = array<i32>} : memref<128x128xbf16, #tpu.memory_space<vmem>>, vector<128x128xbf16>,
      %cst_14 = arith.constant dense<0.000000e+00> : vector<128xf32>
      %15 = vector.multi_reduction <add>, %12, %cst_14 [0] : vector<128x128xf32> to vector<128xf32>
      %16 = vector.shape_cast %15 : vector<128xf32> to vector<1x128xf32>
      %17 = arith.mulf %12, %12 : vector<128x128xf32>
      %cst_15 = arith.constant dense<0.000000e+00> : vector<128xf32>
      %18 = vector.multi_reduction <add>, %17, %cst_15 [0] : vector<128x128xf32> to vector<128xf32>
      %19 = vector.shape_cast %18 : vector<128xf32> to vector<1x128xf32>
      %cst_16 = arith.constant 0.000000e+00 : f32
      %20 = vector.broadcast %cst_16 : f32 to vector<6x128xf32>
      %21 = tpu.concatenate %16, %19, %20 in 0 : vector<1x128xf32>, vector<1x128xf32>, vector<6x128xf32> -> vector<8x128xf32>
      %c0_17 = arith.constant 0 : index
      %c0_18 = arith.constant 0 : index
      %c0_19 = arith.constant 0 : index
      %22 = vector.load %arg5[%c0_17, %c0_18, %c0_19] : memref<1x8x128xf32, #tpu.memory_space<vmem>>, vector<1x8x128xf32>
      %23 = vector.shape_cast %22 : vector<1x8x128xf32> to vector<8x128xf32>
      %24 = vector.shape_cast %21 : vector<8x128xf32> to vector<1x8x128xf32>
      tpu.vector_store %arg5[%c0_17, %c0_18, %c0_19], %24 {strides = array<i32>} : memref<1x8x128xf32, #tpu.memory_space<vmem>>, vector<1x8x128xf32>,
    } else {
    }
    return
  }
  func.func @transform_0(%arg0: i32, %arg1: i32) -> (i32, i32) {
    %c0_i32 = arith.constant 0 : i32
    return %arg0, %arg1 : i32, i32
  }
  func.func @transform_1(%arg0: i32, %arg1: i32) -> (i32, i32) {
    %c0_i32 = arith.constant 0 : i32
    %c0_i32_0 = arith.constant 0 : i32
    return %arg1, %c0_i32 : i32, i32
  }
  func.func @transform_2(%arg0: i32, %arg1: i32) -> (i32, i32) {
    %c0_i32 = arith.constant 0 : i32
    %c0_i32_0 = arith.constant 0 : i32
    return %arg0, %c0_i32 : i32, i32
  }
  func.func @transform_3(%arg0: i32, %arg1: i32) -> (i32, i32, i32) {
    %c0_i32 = arith.constant 0 : i32
    %c0_i32_0 = arith.constant 0 : i32
    %c0_i32_1 = arith.constant 0 : i32
    return %arg0, %c0_i32, %c0_i32_0 : i32, i32, i32
  }
}

</mosaic_0001>

<llo_original>
// kernel: tpu_custom_call.1
$region0: #{tpu_custom_call.1}
  #allocation0 [shape = 'u32[]', space=smem, size = 0x4, offset = 0x4, fixed_abs, tag = 'smem constant byte address 0x4 - core index']
  #allocation1 [shape = 'u32[144,128]{1,0:T(1,128)}', space=vmem, size = 0x12000, scoped, tag = 'internal scratch']
  #allocation2 [shape = 'f32[128,128]{1,0:T(8,128)}', space=vmem, size = 0x10000, scoped, tag = 'scratch operand']
  %s0 = inlined_call_operand.hbm [shape: bf16[128,128], index: 0, kind: input, shape index: {}]
  %s1 = inlined_call_operand.hbm [shape: bf16[128,128], index: 1, kind: input, shape index: {}]
  %s2 = inlined_call_operand.hbm [shape: bf16[128,128], index: 2, kind: output, shape index: {0}]
  %s3 = inlined_call_operand.hbm [shape: f32[1,8,128], index: 3, kind: output, shape index: {1}]
  %4 = xla_tuple %s2, %s3
  %s5 = sld [smem:[#allocation0]]
  $region42: #{tpu_custom_call.1} parent=0
    _
  %s7 = ssub.s32 1, %s5
  %s8 = scalar_select 0, %s7, %s5
  $region1: #{tpu_custom_call.1} parent=0
    #allocation3 [shape = 'u8[32768]{0}', space=vmem, size = 0x8000, scoped, tag = 'input window, operand 0, single buffered']
    #allocation4 [shape = 's32[1]{0}', space=sflag, size = 0x4, scoped, tag = 'scoped memory for tpu_custom_call.1']
    #allocation5 [shape = 's32[1]{0}', space=sflag, size = 0x4, scoped, tag = 'scoped memory for tpu_custom_call.1']
    #allocation6 [shape = 'u8[32768]{0}', space=vmem, size = 0x8000, scoped, tag = 'input window, operand 1, single buffered']
    #allocation7 [shape = 's32[1]{0}', space=sflag, size = 0x4, scoped, tag = 'scoped memory for tpu_custom_call.1']
    #allocation8 [shape = 'u8[32768]{0}', space=vmem, size = 0x8000, scoped, tag = 'output window, operand 0, single buffered']
    #allocation9 [shape = 'u8[4096]{0}', space=vmem, size = 0x1000, scoped, tag = 'output window, operand 1, single buffered']
    #allocation10 [shape = 's32[1]{0}', space=sflag, size = 0x4, scoped, tag = 'scoped memory for tpu_custom_call.1']
    %9 = vsyncpa [#allocation4], 0
    %10 = vsyncpa [#allocation7], 0
    %11 = vsyncpa [#allocation5], 0
    %12 = vsyncpa [#allocation10], 0
    // Predicated region
    $region2: #{tpu_custom_call.1} parent=1 // pred_check
      _
    $region3: #{tpu_custom_call.1} parent=1 // pred_check_branch
      %14 = sbr.rel (0) target = $region5
    $region4: #{tpu_custom_call.1} parent=1 // pred_region
      %s16 = ssub.s32 1024, 1024
      %17 = vsyncadd [#allocation4], %s16
      %s18 = sshll.u32 [#allocation3], 4
      %s19 = int_to_ptr.vmem [resolvable:$true] %s18
      %24 = dma.hbm_to_vmem [thread:$0]  %s0, 1024, %s19, [#allocation4], 64, 64, 4
    $region5: #{tpu_custom_call.1} parent=1 // pred_fallthru
      _
    // Predicated region
    $region6: #{tpu_custom_call.1} parent=1 // pred_check
      _
    $region7: #{tpu_custom_call.1} parent=1 // pred_check_branch
      %26 = sbr.rel (0) target = $region9
    $region8: #{tpu_custom_call.1} parent=1 // pred_region
      %s28 = ssub.s32 1024, 1024
      %29 = vsyncadd [#allocation7], %s28
      %s30 = sshll.u32 [#allocation6], 4
      %s31 = int_to_ptr.vmem [resolvable:$true] %s30
      %36 = dma.hbm_to_vmem [thread:$0]  %s1, 1024, %s31, [#allocation7], 64, 64, 4
    $region9: #{tpu_custom_call.1} parent=1 // pred_fallthru
      _
    // Predicated region
    $region10: #{tpu_custom_call.1} parent=1 // pred_check
      _
    $region11: #{tpu_custom_call.1} parent=1 // pred_check_branch
      %38 = sbr.rel (0) target = $region13
    $region12: #{tpu_custom_call.1} parent=1 // pred_region
      %39 = dma.done [#allocation4], 1024
    $region13: #{tpu_custom_call.1} parent=1 // pred_fallthru
      _
    // Predicated region
    $region14: #{tpu_custom_call.1} parent=1 // pred_check
      _
    $region15: #{tpu_custom_call.1} parent=1 // pred_check_branch
      %41 = sbr.rel (0) target = $region17
    $region16: #{tpu_custom_call.1} parent=1 // pred_region
      %42 = dma.done [#allocation7], 1024
    $region17: #{tpu_custom_call.1} parent=1 // pred_fallthru
      _
    %p44 = scmp.eq.s32.totalorder 0, 0
    // Predicated region
    $region18: #{tpu_custom_call.1} parent=1 // pred_check
      %p45 = pneg %p44
    $region19: #{tpu_custom_call.1} parent=1 // pred_check_branch
      %47 = sbr.rel (%p45) target = $region21
    $region20: #{tpu_custom_call.1} parent=1 // pred_region
      %48 = vst [vmem:[#allocation2] sm:$0xff] 0.0
      %49 = vst [vmem:[#allocation2 + $0x8] sm:$0xff] 0.0
      %50 = vst [vmem:[#allocation2 + $0x10] sm:$0xff] 0.0
      %51 = vst [vmem:[#allocation2 + $0x18] sm:$0xff] 0.0
      %52 = vst [vmem:[#allocation2 + $0x20] sm:$0xff] 0.0
      %53 = vst [vmem:[#allocation2 + $0x28] sm:$0xff] 0.0
      %54 = vst [vmem:[#allocation2 + $0x30] sm:$0xff] 0.0
      %55 = vst [vmem:[#allocation2 + $0x38] sm:$0xff] 0.0
      %56 = vst [vmem:[#allocation2 + $0x40] sm:$0xff] 0.0
      %57 = vst [vmem:[#allocation2 + $0x48] sm:$0xff] 0.0
      %58 = vst [vmem:[#allocation2 + $0x50] sm:$0xff] 0.0
      %59 = vst [vmem:[#allocation2 + $0x58] sm:$0xff] 0.0
      %60 = vst [vmem:[#allocation2 + $0x60] sm:$0xff] 0.0
      %61 = vst [vmem:[#allocation2 + $0x68] sm:$0xff] 0.0
      %62 = vst [vmem:[#allocation2 + $0x70] sm:$0xff] 0.0
      %63 = vst [vmem:[#allocation2 + $0x78] sm:$0xff] 0.0
    $region21: #{tpu_custom_call.1} parent=1 // pred_fallthru
      _
    %v64 = vld [vmem:[#allocation2] sm:$0xff]
    %v65 = vld [vmem:[#allocation2 + $0x8] sm:$0xff]
    %v66 = vld [vmem:[#allocation2 + $0x10] sm:$0xff]
    %v67 = vld [vmem:[#allocation2 + $0x18] sm:$0xff]
    %v68 = vld [vmem:[#allocation2 + $0x20] sm:$0xff]
    %v69 = vld [vmem:[#allocation2 + $0x28] sm:$0xff]
    %v70 = vld [vmem:[#allocation2 + $0x30] sm:$0xff]
    %v71 = vld [vmem:[#allocation2 + $0x38] sm:$0xff]
    %v72 = vld [vmem:[#allocation2 + $0x40] sm:$0xff]
    %v73 = vld [vmem:[#allocation2 + $0x48] sm:$0xff]
    %v74 = vld [vmem:[#allocation2 + $0x50] sm:$0xff]
    %v75 = vld [vmem:[#allocation2 + $0x58] sm:$0xff]
    %v76 = vld [vmem:[#allocation2 + $0x60] sm:$0xff]
    %v77 = vld [vmem:[#allocation2 + $0x68] sm:$0xff]
    %v78 = vld [vmem:[#allocation2 + $0x70] sm:$0xff]
    %v79 = vld [vmem:[#allocation2 + $0x78] sm:$0xff]
    %v80 = vld [vmem:[#allocation3] sm:$0xf]
    %v81 = vld [vmem:[#allocation3 + $0x4] sm:$0xf]
    %v82 = vld [vmem:[#allocation3 + $0x8] sm:$0xf]
    %v83 = vld [vmem:[#allocation3 + $0xc] sm:$0xf]
    %v84 = vld [vmem:[#allocation3 + $0x10] sm:$0xf]
    %v85 = vld [vmem:[#allocation3 + $0x14] sm:$0xf]
    %v86 = vld [vmem:[#allocation3 + $0x18] sm:$0xf]
    %v87 = vld [vmem:[#allocation3 + $0x1c] sm:$0xf]
    %v88 = vld [vmem:[#allocation3 + $0x20] sm:$0xf]
    %v89 = vld [vmem:[#allocation3 + $0x24] sm:$0xf]
    %v90 = vld [vmem:[#allocation3 + $0x28] sm:$0xf]
    %v91 = vld [vmem:[#allocation3 + $0x2c] sm:$0xf]
    %v92 = vld [vmem:[#allocation3 + $0x30] sm:$0xf]
    %v93 = vld [vmem:[#allocation3 + $0x34] sm:$0xf]
    %v94 = vld [vmem:[#allocation3 + $0x38] sm:$0xf]
    %v95 = vld [vmem:[#allocation3 + $0x3c] sm:$0xf]
    %v96 = vld [vmem:[#allocation6] sm:$0xf]
    %v97 = vld [vmem:[#allocation6 + $0x4] sm:$0xf]
    %v98 = vld [vmem:[#allocation6 + $0x8] sm:$0xf]
    %v99 = vld [vmem:[#allocation6 + $0xc] sm:$0xf]
    %v100 = vld [vmem:[#allocation6 + $0x10] sm:$0xf]
    %v101 = vld [vmem:[#allocation6 + $0x14] sm:$0xf]
    %v102 = vld [vmem:[#allocation6 + $0x18] sm:$0xf]
    %v103 = vld [vmem:[#allocation6 + $0x1c] sm:$0xf]
    %v104 = vld [vmem:[#allocation6 + $0x20] sm:$0xf]
    %v105 = vld [vmem:[#allocation6 + $0x24] sm:$0xf]
    %v106 = vld [vmem:[#allocation6 + $0x28] sm:$0xf]
    %v107 = vld [vmem:[#allocation6 + $0x2c] sm:$0xf]
    %v108 = vld [vmem:[#allocation6 + $0x30] sm:$0xf]
    %v109 = vld [vmem:[#allocation6 + $0x34] sm:$0xf]
    %v110 = vld [vmem:[#allocation6 + $0x38] sm:$0xf]
    %v111 = vld [vmem:[#allocation6 + $0x3c] sm:$0xf]
    %v128 = vunpack.c.l.b16 %v80
    %v129 = vunpack.c.l.b16 %v81
    %v130 = vunpack.c.l.b16 %v82
    %v131 = vunpack.c.l.b16 %v83
    %v132 = vunpack.c.l.b16 %v84
    %v133 = vunpack.c.l.b16 %v85
    %v134 = vunpack.c.l.b16 %v86
    %v135 = vunpack.c.l.b16 %v87
    %v136 = vunpack.c.l.b16 %v88
    %v137 = vunpack.c.l.b16 %v89
    %v138 = vunpack.c.l.b16 %v90
    %v139 = vunpack.c.l.b16 %v91
    %v140 = vunpack.c.l.b16 %v92
    %v141 = vunpack.c.l.b16 %v93
    %v142 = vunpack.c.l.b16 %v94
    %v143 = vunpack.c.l.b16 %v95
    %v144 = vpack.c.b16 %v129, %v128
    %v145 = vpack.c.b16 %v131, %v130
    %v146 = vpack.c.b16 %v133, %v132
    %v147 = vpack.c.b16 %v135, %v134
    %v148 = vpack.c.b16 %v137, %v136
    %v149 = vpack.c.b16 %v139, %v138
    %v150 = vpack.c.b16 %v141, %v140
    %v151 = vpack.c.b16 %v143, %v142
    %v176 = vunpack.c.l.b16 %v96
    %v177 = vunpack.c.l.b16 %v97
    %v178 = vunpack.c.l.b16 %v98
    %v179 = vunpack.c.l.b16 %v99
    %v180 = vunpack.c.l.b16 %v100
    %v181 = vunpack.c.l.b16 %v101
    %v182 = vunpack.c.l.b16 %v102
    %v183 = vunpack.c.l.b16 %v103
    %v184 = vunpack.c.l.b16 %v104
    %v185 = vunpack.c.l.b16 %v105
    %v186 = vunpack.c.l.b16 %v106
    %v187 = vunpack.c.l.b16 %v107
    %v188 = vunpack.c.l.b16 %v108
    %v189 = vunpack.c.l.b16 %v109
    %v190 = vunpack.c.l.b16 %v110
    %v191 = vunpack.c.l.b16 %v111
    %v192 = vpack.c.b16 %v177, %v176
    %v193 = vpack.c.b16 %v179, %v178
    %v194 = vpack.c.b16 %v181, %v180
    %v195 = vpack.c.b16 %v183, %v182
    %v196 = vpack.c.b16 %v185, %v184
    %v197 = vpack.c.b16 %v187, %v186
    %v198 = vpack.c.b16 %v189, %v188
    %v199 = vpack.c.b16 %v191, %v190
    %208 = vmatprep.subr.bf16.mxu0 0
    %209 = vmatpush1.bf16.msra.mxu0 %v199
    %210 = vmatprep.subr.bf16.mxu0 0
    %211 = vmatpush1.bf16.msra.mxu0 %v198
    %212 = vmatprep.subr.bf16.mxu0 0
    %213 = vmatpush1.bf16.msra.mxu0 %v197
    %214 = vmatprep.subr.bf16.mxu0 0
    %215 = vmatpush1.bf16.msra.mxu0 %v196
    %216 = vmatprep.subr.bf16.mxu0 0
    %217 = vmatpush1.bf16.msra.mxu0 %v195
    %218 = vmatprep.subr.bf16.mxu0 0
    %219 = vmatpush1.bf16.msra.mxu0 %v194
    %220 = vmatprep.subr.bf16.mxu0 0
    %221 = vmatpush1.bf16.msra.mxu0 %v193
    %222 = vmatprep.subr.bf16.mxu0 0
    %223 = vmatpush1.bf16.msra.mxu0 %v192
    %224 = vmatprep.subr.bf16.mxu0 0
    %225 = vmatpush2.bf16.msra.mxu0 0
    %226 = vmatprep.subr.bf16.mxu0 0
    %227 = vmatpush2.bf16.msra.mxu0 0
    %228 = vmatprep.subr.bf16.mxu0 0
    %229 = vmatpush2.bf16.msra.mxu0 0
    %230 = vmatprep.subr.bf16.mxu0 0
    %231 = vmatpush2.bf16.msra.mxu0 0
    %232 = vmatprep.subr.bf16.mxu0 0
    %233 = vmatpush2.bf16.msra.mxu0 0
    %234 = vmatprep.subr.bf16.mxu0 0
    %235 = vmatpush2.bf16.msra.mxu0 0
    %236 = vmatprep.subr.bf16.mxu0 0
    %237 = vmatpush2.bf16.msra.mxu0 0
    %238 = vmatprep.subr.bf16.mxu0 0
    %239 = vmatpush2.bf16.msra.mxu0 0
    %240 = vmatprep.mubr.bf16.mxu0 0
    %241 = vmatmul.mubr.bf16.gmra.mxu0 %v144
    %v242 = vpop.f32.mrf.mxu0
    %v243 = vadd.f32 0.0, %v242
    %v244 = vpop.f32.mrf.mxu0
    %v245 = vpop.f32.mrf.mxu0
    %v246 = vadd.f32 0.0, %v245
    %v247 = vpop.f32.mrf.mxu0
    %248 = vmatprep.mubr.bf16.mxu0 0
    %249 = vmatmul.mubr.bf16.gmra.mxu0 %v145
    %v250 = vpop.f32.mrf.mxu0
    %v251 = vadd.f32 0.0, %v250
    %v252 = vpop.f32.mrf.mxu0
    %v253 = vpop.f32.mrf.mxu0
    %v254 = vadd.f32 0.0, %v253
    %v255 = vpop.f32.mrf.mxu0
    %256 = vmatprep.mubr.bf16.mxu0 0
    %257 = vmatmul.mubr.bf16.gmra.mxu0 %v146
    %v258 = vpop.f32.mrf.mxu0
    %v259 = vadd.f32 0.0, %v258
    %v260 = vpop.f32.mrf.mxu0
    %v261 = vpop.f32.mrf.mxu0
    %v262 = vadd.f32 0.0, %v261
    %v263 = vpop.f32.mrf.mxu0
    %264 = vmatprep.mubr.bf16.mxu0 0
    %265 = vmatmul.mubr.bf16.gmra.mxu0 %v147
    %v266 = vpop.f32.mrf.mxu0
    %v267 = vadd.f32 0.0, %v266
    %v268 = vpop.f32.mrf.mxu0
    %v269 = vpop.f32.mrf.mxu0
    %v270 = vadd.f32 0.0, %v269
    %v271 = vpop.f32.mrf.mxu0
    %272 = vmatprep.mubr.bf16.mxu0 0
    %273 = vmatmul.mubr.bf16.gmra.mxu0 %v148
    %v274 = vpop.f32.mrf.mxu0
    %v275 = vadd.f32 0.0, %v274
    %v276 = vpop.f32.mrf.mxu0
    %v277 = vpop.f32.mrf.mxu0
    %v278 = vadd.f32 0.0, %v277
    %v279 = vpop.f32.mrf.mxu0
    %280 = vmatprep.mubr.bf16.mxu0 0
    %281 = vmatmul.mubr.bf16.gmra.mxu0 %v149
    %v282 = vpop.f32.mrf.mxu0
    %v283 = vadd.f32 0.0, %v282
    %v284 = vpop.f32.mrf.mxu0
    %v285 = vpop.f32.mrf.mxu0
    %v286 = vadd.f32 0.0, %v285
    %v287 = vpop.f32.mrf.mxu0
    %288 = vmatprep.mubr.bf16.mxu0 0
    %289 = vmatmul.mubr.bf16.gmra.mxu0 %v150
    %v290 = vpop.f32.mrf.mxu0
    %v291 = vadd.f32 0.0, %v290
    %v292 = vpop.f32.mrf.mxu0
    %v293 = vpop.f32.mrf.mxu0
    %v294 = vadd.f32 0.0, %v293
    %v295 = vpop.f32.mrf.mxu0
    %296 = vmatprep.mubr.bf16.mxu0 0
    %297 = vmatmul.mubr.bf16.gmra.mxu0 %v151
    %v298 = vpop.f32.mrf.mxu0
    %v299 = vadd.f32 0.0, %v298
    %v300 = vpop.f32.mrf.mxu0
    %v301 = vpop.f32.mrf.mxu0
    %v302 = vadd.f32 0.0, %v301
    %v303 = vpop.f32.mrf.mxu0
    %304 = vdwg.mxu0
    %v305 = vadd.f32 %v64, %v243
    %v306 = vadd.f32 %v65, %v246
    %v307 = vadd.f32 %v66, %v251
    %v308 = vadd.f32 %v67, %v254
    %v309 = vadd.f32 %v68, %v259
    %v310 = vadd.f32 %v69, %v262
    %v311 = vadd.f32 %v70, %v267
    %v312 = vadd.f32 %v71, %v270
    %v313 = vadd.f32 %v72, %v275
    %v314 = vadd.f32 %v73, %v278
    %v315 = vadd.f32 %v74, %v283
    %v316 = vadd.f32 %v75, %v286
    %v317 = vadd.f32 %v76, %v291
    %v318 = vadd.f32 %v77, %v294
    %v319 = vadd.f32 %v78, %v299
    %v320 = vadd.f32 %v79, %v302
    %321 = vst [vmem:[#allocation2] sm:$0xff] %v305
    %322 = vst [vmem:[#allocation2 + $0x8] sm:$0xff] %v306
    %323 = vst [vmem:[#allocation2 + $0x10] sm:$0xff] %v307
    %324 = vst [vmem:[#allocation2 + $0x18] sm:$0xff] %v308
    %325 = vst [vmem:[#allocation2 + $0x20] sm:$0xff] %v309
    %326 = vst [vmem:[#allocation2 + $0x28] sm:$0xff] %v310
    %327 = vst [vmem:[#allocation2 + $0x30] sm:$0xff] %v311
    %328 = vst [vmem:[#allocation2 + $0x38] sm:$0xff] %v312
    %329 = vst [vmem:[#allocation2 + $0x40] sm:$0xff] %v313
    %330 = vst [vmem:[#allocation2 + $0x48] sm:$0xff] %v314
    %331 = vst [vmem:[#allocation2 + $0x50] sm:$0xff] %v315
    %332 = vst [vmem:[#allocation2 + $0x58] sm:$0xff] %v316
    %333 = vst [vmem:[#allocation2 + $0x60] sm:$0xff] %v317
    %334 = vst [vmem:[#allocation2 + $0x68] sm:$0xff] %v318
    %335 = vst [vmem:[#allocation2 + $0x70] sm:$0xff] %v319
    %336 = vst [vmem:[#allocation2 + $0x78] sm:$0xff] %v320
    // Predicated region
    $region22: #{tpu_custom_call.1} parent=1 // pred_check
      %p337 = pneg %p44
    $region23: #{tpu_custom_call.1} parent=1 // pred_check_branch
      %339 = sbr.rel (%p337) target = $region25
    $region24: #{tpu_custom_call.1} parent=1 // pred_region
      %v340 = vld [vmem:[#allocation2] sm:$0xff]
      %v341 = vld [vmem:[#allocation2 + $0x8] sm:$0xff]
      %v342 = vld [vmem:[#allocation2 + $0x10] sm:$0xff]
      %v343 = vld [vmem:[#allocation2 + $0x18] sm:$0xff]
      %v344 = vld [vmem:[#allocation2 + $0x20] sm:$0xff]
      %v345 = vld [vmem:[#allocation2 + $0x28] sm:$0xff]
      %v346 = vld [vmem:[#allocation2 + $0x30] sm:$0xff]
      %v347 = vld [vmem:[#allocation2 + $0x38] sm:$0xff]
      %v348 = vld [vmem:[#allocation2 + $0x40] sm:$0xff]
      %v349 = vld [vmem:[#allocation2 + $0x48] sm:$0xff]
      %v350 = vld [vmem:[#allocation2 + $0x50] sm:$0xff]
      %v351 = vld [vmem:[#allocation2 + $0x58] sm:$0xff]
      %v352 = vld [vmem:[#allocation2 + $0x60] sm:$0xff]
      %v353 = vld [vmem:[#allocation2 + $0x68] sm:$0xff]
      %v354 = vld [vmem:[#allocation2 + $0x70] sm:$0xff]
      %v355 = vld [vmem:[#allocation2 + $0x78] sm:$0xff]
      %v356 = vpack.c.bf16 %v341, %v340
      %v357 = vpack.c.bf16 %v343, %v342
      %v358 = vpack.c.bf16 %v345, %v344
      %v359 = vpack.c.bf16 %v347, %v346
      %v360 = vpack.c.bf16 %v349, %v348
      %v361 = vpack.c.bf16 %v351, %v350
      %v362 = vpack.c.bf16 %v353, %v352
      %v363 = vpack.c.bf16 %v355, %v354
      %v372 = vunpack.c.l.b16 %v356
      %v373 = vunpack.c.h.b16 %v356
      %v374 = vunpack.c.l.b16 %v357
      %v375 = vunpack.c.h.b16 %v357
      %v376 = vunpack.c.l.b16 %v358
      %v377 = vunpack.c.h.b16 %v358
      %v378 = vunpack.c.l.b16 %v359
      %v379 = vunpack.c.h.b16 %v359
      %v380 = vunpack.c.l.b16 %v360
      %v381 = vunpack.c.h.b16 %v360
      %v382 = vunpack.c.l.b16 %v361
      %v383 = vunpack.c.h.b16 %v361
      %v384 = vunpack.c.l.b16 %v362
      %v385 = vunpack.c.h.b16 %v362
      %v386 = vunpack.c.l.b16 %v363
      %v387 = vunpack.c.h.b16 %v363
      %v388 = vpack.c.b16 %v372, %v372
      %v389 = vpack.c.b16 %v373, %v373
      %v390 = vpack.c.b16 %v374, %v374
      %v391 = vpack.c.b16 %v375, %v375
      %v392 = vpack.c.b16 %v376, %v376
      %v393 = vpack.c.b16 %v377, %v377
      %v394 = vpack.c.b16 %v378, %v378
      %v395 = vpack.c.b16 %v379, %v379
      %v396 = vpack.c.b16 %v380, %v380
      %v397 = vpack.c.b16 %v381, %v381
      %v398 = vpack.c.b16 %v382, %v382
      %v399 = vpack.c.b16 %v383, %v383
      %v400 = vpack.c.b16 %v384, %v384
      %v401 = vpack.c.b16 %v385, %v385
      %v402 = vpack.c.b16 %v386, %v386
      %v403 = vpack.c.b16 %v387, %v387
      %420 = vst [vmem:[#allocation8] sm:$0xf] %v388
      %421 = vst [vmem:[#allocation8 + $0x4] sm:$0xf] %v389
      %422 = vst [vmem:[#allocation8 + $0x8] sm:$0xf] %v390
      %423 = vst [vmem:[#allocation8 + $0xc] sm:$0xf] %v391
      %424 = vst [vmem:[#allocation8 + $0x10] sm:$0xf] %v392
      %425 = vst [vmem:[#allocation8 + $0x14] sm:$0xf] %v393
      %426 = vst [vmem:[#allocation8 + $0x18] sm:$0xf] %v394
      %427 = vst [vmem:[#allocation8 + $0x1c] sm:$0xf] %v395
      %428 = vst [vmem:[#allocation8 + $0x20] sm:$0xf] %v396
      %429 = vst [vmem:[#allocation8 + $0x24] sm:$0xf] %v397
      %430 = vst [vmem:[#allocation8 + $0x28] sm:$0xf] %v398
      %431 = vst [vmem:[#allocation8 + $0x2c] sm:$0xf] %v399
      %432 = vst [vmem:[#allocation8 + $0x30] sm:$0xf] %v400
      %433 = vst [vmem:[#allocation8 + $0x34] sm:$0xf] %v401
      %434 = vst [vmem:[#allocation8 + $0x38] sm:$0xf] %v402
      %435 = vst [vmem:[#allocation8 + $0x3c] sm:$0xf] %v403
      %v436 = vadd.f32 %v340, %v341
      %v437 = vadd.f32 %v436, %v342
      %v438 = vadd.f32 %v437, %v343
      %v439 = vadd.f32 %v438, %v344
      %v440 = vadd.f32 %v439, %v345
      %v441 = vadd.f32 %v440, %v346
      %v442 = vadd.f32 %v441, %v347
      %v443 = vadd.f32 %v442, %v348
      %v444 = vadd.f32 %v443, %v349
      %v445 = vadd.f32 %v444, %v350
      %v446 = vadd.f32 %v445, %v351
      %v447 = vadd.f32 %v446, %v352
      %v448 = vadd.f32 %v447, %v353
      %v449 = vadd.f32 %v448, %v354
      %v450 = vadd.f32 %v449, %v355
      %v451 = vrot.slane %v450, 4
      %v452 = vadd.f32 %v450, %v451
      %v453 = vrot.slane %v452, 2
      %v454 = vadd.f32 %v452, %v453
      %v455 = vrot.slane %v454, 1
      %v456 = vadd.f32 %v454, %v455
      %v457 = vmul.f32 %v340, %v340
      %v458 = vmul.f32 %v341, %v341
      %v459 = vmul.f32 %v342, %v342
      %v460 = vmul.f32 %v343, %v343
      %v461 = vmul.f32 %v344, %v344
      %v462 = vmul.f32 %v345, %v345
      %v463 = vmul.f32 %v346, %v346
      %v464 = vmul.f32 %v347, %v347
      %v465 = vmul.f32 %v348, %v348
      %v466 = vmul.f32 %v349, %v349
      %v467 = vmul.f32 %v350, %v350
      %v468 = vmul.f32 %v351, %v351
      %v469 = vmul.f32 %v352, %v352
      %v470 = vmul.f32 %v353, %v353
      %v471 = vmul.f32 %v354, %v354
      %v472 = vmul.f32 %v355, %v355
      %v473 = vadd.f32 %v457, %v458
      %v474 = vadd.f32 %v473, %v459
      %v475 = vadd.f32 %v474, %v460
      %v476 = vadd.f32 %v475, %v461
      %v477 = vadd.f32 %v476, %v462
      %v478 = vadd.f32 %v477, %v463
      %v479 = vadd.f32 %v478, %v464
      %v480 = vadd.f32 %v479, %v465
      %v481 = vadd.f32 %v480, %v466
      %v482 = vadd.f32 %v481, %v467
      %v483 = vadd.f32 %v482, %v468
      %v484 = vadd.f32 %v483, %v469
      %v485 = vadd.f32 %v484, %v470
      %v486 = vadd.f32 %v485, %v471
      %v487 = vadd.f32 %v486, %v472
      %v488 = vrot.slane %v487, 4
      %v489 = vadd.f32 %v487, %v488
      %v490 = vrot.slane %v489, 2
      %v491 = vadd.f32 %v489, %v490
      %v492 = vrot.slane %v491, 1
      %v493 = vadd.f32 %v491, %v492
      %vm494 = vcmask 1040384
      %v495 = vsel %vm494, %v456, %v493
      %vm496 = vcmask 1041408
      %v497 = vsel %vm496, %v495, 0.0
      %498 = vst [vmem:[#allocation9] sm:$0xff] %v497
    $region25: #{tpu_custom_call.1} parent=1 // pred_fallthru
      _
    // Predicated region
    $region26: #{tpu_custom_call.1} parent=1 // pred_check
      _
    $region27: #{tpu_custom_call.1} parent=1 // pred_check_branch
      %500 = sbr.rel (0) target = $region29
    $region28: #{tpu_custom_call.1} parent=1 // pred_region
      %s502 = ssub.s32 1024, 1024
      %503 = vsyncadd [#allocation5], %s502
      %s504 = sshll.u32 [#allocation8], 4
      %s505 = int_to_ptr.vmem [resolvable:$true] %s504
      %510 = dma.vmem_to_hbm [thread:$0]  %s505, 1024, %s2, [#allocation5], 64, 64, 4
    $region29: #{tpu_custom_call.1} parent=1 // pred_fallthru
      _
    // Predicated region
    $region30: #{tpu_custom_call.1} parent=1 // pred_check
      _
    $region31: #{tpu_custom_call.1} parent=1 // pred_check_branch
      %512 = sbr.rel (0) target = $region33
    $region32: #{tpu_custom_call.1} parent=1 // pred_region
      %s514 = ssub.s32 128, 128
      %515 = vsyncadd [#allocation10], %s514
      %s517 = sshll.u32 [#allocation9], 4
      %s518 = int_to_ptr.vmem [resolvable:$true] %s517
      %520 = dma.vmem_to_hbm [thread:$0]  %s518, 128, %s3, [#allocation10]
    $region33: #{tpu_custom_call.1} parent=1 // pred_fallthru
      _
    // Predicated region
    $region34: #{tpu_custom_call.1} parent=1 // pred_check
      _
    $region35: #{tpu_custom_call.1} parent=1 // pred_check_branch
      %522 = sbr.rel (0) target = $region37
    $region36: #{tpu_custom_call.1} parent=1 // pred_region
      %523 = dma.done [#allocation5], 1024
    $region37: #{tpu_custom_call.1} parent=1 // pred_fallthru
      _
    // Predicated region
    $region38: #{tpu_custom_call.1} parent=1 // pred_check
      _
    $region39: #{tpu_custom_call.1} parent=1 // pred_check_branch
      %525 = sbr.rel (0) target = $region41
    $region40: #{tpu_custom_call.1} parent=1 // pred_region
      %526 = dma.done [#allocation10], 128
    $region41: #{tpu_custom_call.1} parent=1 // pred_fallthru
      _
    %527 = vsyncpa [#allocation4], 1
    %528 = vsyncpa [#allocation7], 1
    %529 = vsyncpa [#allocation5], 1
    %530 = vsyncpa [#allocation10], 1

</llo_original>
